<compile_context>
chip_gen: v6e
topology: v6e:2x2x1
jax: 0.10.0
libtpu: 0.0.40
codegen_flags: <defaults>
</compile_context>

<pallas_src>
import functools

import jax
import jax.numpy as jnp
from jax.experimental import pallas as pl
from jax.experimental.pallas import tpu as pltpu

BN_EPS = 1e-5


def _vmem_capacity_bytes():
    """Physical VMEM of the current TPU generation (fallback: 128 MiB)."""
    try:
        return int(pltpu.get_tpu_info().vmem_capacity_bytes)
    except Exception:  # interpret mode / older runtime
        return 128 << 20


def _pick_tiles(B, D, N, vmem_cap):
    """Pick (tile_n, tile_k) from a per-generation VMEM budget."""
    # tile_n: lane-dense multiple of 128. Keep >= 2 j-tiles where possible
    # (v7x has 2 TensorCores and j is the only 'parallel' axis), go wider at
    # large N so W DMAs are longer contiguous bursts (v5e/v6e bandwidth).
    if N % 128 != 0:
        tile_n = N
    elif N >= 4096 and N % 512 == 0:
        tile_n = 512
    elif N >= 512 and N % 256 == 0:
        tile_n = 256
    else:
        tile_n = 128

    # Budget ~half of physical VMEM for pipelined buffers (double buffering
    # alive + compiler scratch headroom). Fixed terms: out blocks + params.
    budget = vmem_cap // 2
    fixed = 2 * B * tile_n * 4 + 4 * tile_n * 4
    per_k = 2 * B * 2 + 2 * tile_n * 2          # x (bf16, 2-buf) + W (bf16, 2-buf)
    max_tk = max((budget - fixed) // per_k, 128)

    if D <= max_tk:
        tile_k = D                               # single-K fast path
    else:
        tile_k = None
        for cand in (4096, 2048, 1024, 512, 256, 128):
            if cand <= max_tk and D % cand == 0:
                tile_k = cand
                break
        if tile_k is None:
            tile_k = D                           # fallback: no clean divisor
    return tile_n, tile_k


def _bn_relu(y, g, beta):
    """Training-mode BatchNorm1d (two-pass stats) + affine + ReLU on a tile."""
    mean = jnp.mean(y, axis=0, keepdims=True)                    # (1, tile_n)
    centered = y - mean
    var = jnp.mean(centered * centered, axis=0, keepdims=True)   # stable 2-pass
    scale = g * jax.lax.rsqrt(var + BN_EPS)                      # EUP rsqrt
    return jnp.maximum(centered * scale + beta, 0.0)


def mlp_kernel_fused(x_ref, w_ref, g_ref, beta_ref, o_ref):
    """Single-K fast path: matmul + BN + ReLU straight into o_ref."""
    y = jnp.dot(x_ref[...], w_ref[...], preferred_element_type=jnp.float32)
    o_ref[...] = _bn_relu(y, g_ref[...], beta_ref[...]).astype(o_ref.dtype)


def mlp_kernel_reduce(x_ref, w_ref, g_ref, beta_ref, o_ref):
    """K-reduction path: accumulate directly into o_ref (f32), finalize at k==last."""
    k = pl.program_id(1)

    @pl.when(k == 0)
    def _():
        o_ref[...] = jnp.zeros_like(o_ref)

    o_ref[...] += jnp.dot(x_ref[...], w_ref[...],
                          preferred_element_type=jnp.float32)

    @pl.when(k == pl.num_programs(1) - 1)
    def _():
        o_ref[...] = _bn_relu(o_ref[...], g_ref[...],
                              beta_ref[...]).astype(o_ref.dtype)


@functools.partial(jax.jit, static_argnames=("tile_n", "tile_k"))
def mlp_forward(x, w_t, b, gamma, beta, *, tile_n=None, tile_k=None):
    """Forward of Linear(D->N) -> BatchNorm1d(N, training stats) -> ReLU.

    x: (B, D); w_t: (D, N) Linear weight transposed -- pass it PRE-CAST to
    bf16 (done once at parameter creation) so the kernel streams it directly;
    b: (N,) Linear bias (accepted for parity, unused: cancelled exactly by the
    BN batch-mean subtraction); gamma/beta: (N,) BN affine.  Returns (B, N) f32.
    """
    del b  # mathematically cancelled by training-mode BatchNorm
    B, D = x.shape
    N = w_t.shape[1]

    vmem_cap = _vmem_capacity_bytes()
    auto_tn, auto_tk = _pick_tiles(B, D, N, vmem_cap)
    if tile_n is None:
        tile_n = auto_tn
    if tile_k is None:
        tile_k = auto_tk
    assert N % tile_n == 0, (N, tile_n)
    assert D % tile_k == 0, (D, tile_k)

    # x is tiny (B x D) -- casting it per call is negligible; W must already
    # be bf16 (pre-cast at parameter creation) to avoid doubling its traffic.
    x_bf = x.astype(jnp.bfloat16)
    w_bf = w_t if w_t.dtype == jnp.bfloat16 else w_t.astype(jnp.bfloat16)
    g2 = gamma.reshape(1, N).astype(jnp.float32)
    be2 = beta.reshape(1, N).astype(jnp.float32)

    # VMEM footprint (double-buffered tiles + params); cap the request at the
    # device's physical VMEM minus headroom (v7x is only 64 MiB).
    footprint = (2 * B * tile_k * 2            # x tiles (bf16)
                 + 2 * tile_k * tile_n * 2     # W tiles (bf16)
                 + 2 * B * tile_n * 4          # out tiles (f32)
                 + 4 * tile_n * 4)             # gamma/beta tiles
    vmem_limit = int(min(max(2 * footprint, 32 << 20), int(vmem_cap * 0.85)))

    nj = N // tile_n
    nk = D // tile_k
    # TODO(synk): optionally emit bf16 output (halves writeback) when the
    # consumer permits; kept f32 here for exact PyTorch-module parity.
    out_shape = jax.ShapeDtypeStruct((B, N), jnp.float32)

    if nk == 1:
        # No-reduction fast path: 1-D parallel grid over output tiles.
        grid_spec = pltpu.PrefetchScalarGridSpec(
            num_scalar_prefetch=0,
            grid=(nj,),
            in_specs=[
                pl.BlockSpec((B, D), lambda j: (0, 0)),          # x (whole batch)
                pl.BlockSpec((D, tile_n), lambda j: (0, j)),     # W
                pl.BlockSpec((1, tile_n), lambda j: (0, j)),     # gamma
                pl.BlockSpec((1, tile_n), lambda j: (0, j)),     # beta
            ],
            out_specs=pl.BlockSpec((B, tile_n), lambda j: (0, j)),
        )
        kernel = mlp_kernel_fused
        dim_sem = ("parallel",)
    else:
        # K-reduction path: j parallel (megacore), k arbitrary (reduction last).
        grid_spec = pltpu.PrefetchScalarGridSpec(
            num_scalar_prefetch=0,
            grid=(nj, nk),
            in_specs=[
                pl.BlockSpec((B, tile_k), lambda j, k: (0, k)),        # x
                pl.BlockSpec((tile_k, tile_n), lambda j, k: (k, j)),   # W
                pl.BlockSpec((1, tile_n), lambda j, k: (0, j)),        # gamma
                pl.BlockSpec((1, tile_n), lambda j, k: (0, j)),        # beta
            ],
            out_specs=pl.BlockSpec((B, tile_n), lambda j, k: (0, j)),
        )
        kernel = mlp_kernel_reduce
        dim_sem = ("parallel", "arbitrary")

    return pl.pallas_call(
        kernel,
        out_shape=out_shape,
        grid_spec=grid_spec,
        compiler_params=pltpu.CompilerParams(
            dimension_semantics=dim_sem,
            vmem_limit_bytes=vmem_limit,
        ),
    )(x_bf, w_bf, g2, be2)


def reference_forward(x, w_t, b, gamma, beta):
    """Pure-JAX reference matching the PyTorch module (training-mode BN)."""
    y = x @ w_t + b[None, :]
    mean = jnp.mean(y, axis=0, keepdims=True)
    var = jnp.mean((y - mean) ** 2, axis=0, keepdims=True)
    y = (y - mean) * jax.lax.rsqrt(var + BN_EPS) * gamma[None, :] + beta[None, :]
    return jnp.maximum(y, 0.0)


if __name__ == "__main__":
    # Small shapes consistent with the module: input_dim=32, num_neurons=512, batch=8.
    B, D, N = 8, 32, 512

    key = jax.random.PRNGKey(0)
    kx, kw, kb = jax.random.split(key, 3)

    x = jax.random.normal(kx, (B, D), dtype=jnp.float32)

    # Deterministic parameter init (PyTorch Linear-style uniform bounds).
    bound = 1.0 / jnp.sqrt(jnp.float32(D))
    w = jax.random.uniform(kw, (N, D), minval=-bound, maxval=bound,
                           dtype=jnp.float32)          # PyTorch layout (out, in)
    b = jax.random.uniform(kb, (N,), minval=-bound, maxval=bound,
                           dtype=jnp.float32)
    gamma = jnp.ones((N,), jnp.float32)                # BatchNorm1d weight
    beta = jnp.zeros((N,), jnp.float32)                # BatchNorm1d bias

    # Pre-cast the weight ONCE at parameter-creation time (kernel streams bf16
    # directly; no per-call convert op / extra HBM traffic).
    w_t_bf16 = w.T.astype(jnp.bfloat16)                # (D, N)

    out = mlp_forward(x, w_t_bf16, b, gamma, beta)
    out = jax.block_until_ready(out)
    assert out.shape == (B, N)

    # Tight check against a reference using the same bf16-quantized operands the
    # kernel streams (verifies bias cancellation + folded BN + ReLU exactly).
    x_q = x.astype(jnp.bfloat16).astype(jnp.float32)
    w_q = w_t_bf16.astype(jnp.float32)
    ref_q = reference_forward(x_q, w_q, b, gamma, beta)
    assert jnp.allclose(out, ref_q, atol=1e-4, rtol=1e-4), (
        f"max abs err (quantized ref) = {jnp.max(jnp.abs(out - ref_q))}")

    # Loose check against full-f32 module semantics (bf16 streaming numerics).
    ref_f32 = reference_forward(x, w.T, b, gamma, beta)
    assert jnp.allclose(out, ref_f32, atol=1e-1, rtol=1e-1), (
        f"max abs err (f32 ref) = {jnp.max(jnp.abs(out - ref_f32))}")

    print("KERNEL_OK")
</pallas_src>

<mosaic_0001>
module attributes {stable_mosaic.version = 11 : i64} {
  func.func @mlp_kernel_fused(%arg0: i32, %arg1: memref<8x32xbf16, #tpu.memory_space<vmem>>, %arg2: memref<32x256xbf16, #tpu.memory_space<vmem>>, %arg3: memref<1x256xf32, #tpu.memory_space<vmem>>, %arg4: memref<1x256xf32, #tpu.memory_space<vmem>>, %arg5: memref<8x256xf32, #tpu.memory_space<vmem>>) attributes {dimension_semantics = [#tpu.dimension_semantics<parallel>], iteration_bounds = array<i64: 2>, scalar_prefetch = 0 : i64, scratch_operands = 0 : i64, tpu.core_type = #tpu.core_type<tc>, window_params = [{pipeline_mode = #tpu.pipeline_mode<synchronous>, transform_indices = @transform_0, window_bounds = array<i64: 8, 32>}, {transform_indices = @transform_1, window_bounds = array<i64: 32, 256>}, {transform_indices = @transform_2, window_bounds = array<i64: 1, 256>}, {transform_indices = @transform_3, window_bounds = array<i64: 1, 256>}, {transform_indices = @transform_4, window_bounds = array<i64: 8, 256>}]} {
    %c0 = arith.constant 0 : index
    %c0_0 = arith.constant 0 : index
    %0 = vector.load %arg1[%c0, %c0_0] : memref<8x32xbf16, #tpu.memory_space<vmem>>, vector<8x32xbf16>
    %c0_1 = arith.constant 0 : index
    %c0_2 = arith.constant 0 : index
    %1 = vector.load %arg2[%c0_1, %c0_2] : memref<32x256xbf16, #tpu.memory_space<vmem>>, vector<32x256xbf16>
    %cst = arith.constant dense<0.000000e+00> : vector<8x256xf32>
    %2 = tpu.matmul %0, %1, %cst {dimension_numbers = #tpu.dot_dimension_numbers<[1], [0], [0], [1], [0, 0, 1, 1], [], []>} : vector<8x32xbf16>, vector<32x256xbf16>, vector<8x256xf32> -> vector<8x256xf32>
    %c0_3 = arith.constant 0 : index
    %c0_4 = arith.constant 0 : index
    %3 = vector.load %arg3[%c0_3, %c0_4] : memref<1x256xf32, #tpu.memory_space<vmem>>, vector<1x256xf32>
    %c0_5 = arith.constant 0 : index
    %c0_6 = arith.constant 0 : index
    %4 = vector.load %arg4[%c0_5, %c0_6] : memref<1x256xf32, #tpu.memory_space<vmem>>, vector<1x256xf32>
    %cst_7 = arith.constant dense<0.000000e+00> : vector<256xf32>
    %5 = vector.multi_reduction <add>, %2, %cst_7 [0] : vector<8x256xf32> to vector<256xf32>
    %6 = vector.shape_cast %5 : vector<256xf32> to vector<1x256xf32>
    %cst_8 = arith.constant 8.000000e+00 : f32
    %7 = vector.broadcast %cst_8 : f32 to vector<1x256xf32>
    %8 = arith.divf %6, %7 : vector<1x256xf32>
    %9 = vector.broadcast %8 : vector<1x256xf32> to vector<8x256xf32>
    %10 = arith.subf %2, %9 : vector<8x256xf32>
    %11 = arith.mulf %10, %10 : vector<8x256xf32>
    %cst_9 = arith.constant dense<0.000000e+00> : vector<256xf32>
    %12 = vector.multi_reduction <add>, %11, %cst_9 [0] : vector<8x256xf32> to vector<256xf32>
    %13 = vector.shape_cast %12 : vector<256xf32> to vector<1x256xf32>
    %cst_10 = arith.constant 8.000000e+00 : f32
    %14 = vector.broadcast %cst_10 : f32 to vector<1x256xf32>
    %15 = arith.divf %13, %14 : vector<1x256xf32>
    %cst_11 = arith.constant 9.99999974E-6 : f32
    %16 = vector.broadcast %cst_11 : f32 to vector<1x256xf32>
    %17 = arith.addf %15, %16 : vector<1x256xf32>
    %18 = math.rsqrt %17 : vector<1x256xf32>
    %19 = arith.mulf %3, %18 : vector<1x256xf32>
    %20 = vector.broadcast %19 : vector<1x256xf32> to vector<8x256xf32>
    %21 = arith.mulf %10, %20 : vector<8x256xf32>
    %22 = vector.broadcast %4 : vector<1x256xf32> to vector<8x256xf32>
    %23 = arith.addf %21, %22 : vector<8x256xf32>
    %cst_12 = arith.constant 0.000000e+00 : f32
    %24 = vector.broadcast %cst_12 : f32 to vector<8x256xf32>
    %25 = arith.maximumf %23, %24 : vector<8x256xf32>
    %c0_13 = arith.constant 0 : index
    %c0_14 = arith.constant 0 : index
    %26 = vector.load %arg5[%c0_13, %c0_14] : memref<8x256xf32, #tpu.memory_space<vmem>>, vector<8x256xf32>
    tpu.vector_store %arg5[%c0_13, %c0_14], %25 {strides = array<i32>} : memref<8x256xf32, #tpu.memory_space<vmem>>, vector<8x256xf32>,
    return
  }
  func.func @transform_0(%arg0: i32) -> (i32, i32) {
    %c0_i32 = arith.constant 0 : i32
    %c0_i32_0 = arith.constant 0 : i32
    %c0_i32_1 = arith.constant 0 : i32
    return %c0_i32, %c0_i32_0 : i32, i32
  }
  func.func @transform_1(%arg0: i32) -> (i32, i32) {
    %c0_i32 = arith.constant 0 : i32
    %c0_i32_0 = arith.constant 0 : i32
    return %c0_i32, %arg0 : i32, i32
  }
  func.func @transform_2(%arg0: i32) -> (i32, i32) {
    %c0_i32 = arith.constant 0 : i32
    %c0_i32_0 = arith.constant 0 : i32
    return %c0_i32, %arg0 : i32, i32
  }
  func.func @transform_3(%arg0: i32) -> (i32, i32) {
    %c0_i32 = arith.constant 0 : i32
    %c0_i32_0 = arith.constant 0 : i32
    return %c0_i32, %arg0 : i32, i32
  }
  func.func @transform_4(%arg0: i32) -> (i32, i32) {
    %c0_i32 = arith.constant 0 : i32
    %c0_i32_0 = arith.constant 0 : i32
    return %c0_i32, %arg0 : i32, i32
  }
}

</mosaic_0001>

<llo_original>
// kernel: mlp_forward.1
$region0: #{mlp_forward.1}
  #allocation0 [shape = 'u32[]', space=smem, size = 0x4, offset = 0x4, fixed_abs, tag = 'smem constant byte address 0x4 - core index']
  #allocation1 [shape = 'u32[144,128]{1,0:T(1,128)}', space=vmem, size = 0x12000, scoped, tag = 'internal scratch']
  %s0 = inlined_call_operand.vmem [shape: bf16[8,32], index: 0, kind: input, shape index: {}]
  %s1 = inlined_call_operand.hbm [shape: bf16[32,512], index: 1, kind: input, shape index: {}]
  %s2 = inlined_call_operand.vmem [shape: f32[1,512], index: 2, kind: input, shape index: {}]
  %s3 = inlined_call_operand.vmem [shape: f32[1,512], index: 3, kind: input, shape index: {}]
  %s4 = inlined_call_operand.hbm [shape: f32[8,512], index: 4, kind: output, shape index: {}]
  %s5 = sld [smem:[#allocation0]]
  $region53: #{mlp_forward.1} parent=0
    _
  %s7 = ssub.s32 1, %s5
  %s8 = scalar_select 0, %s7, %s5
  $region1: #{mlp_forward.1} parent=0
    #allocation2 [shape = 'u8[32768]{0}', space=vmem, size = 0x8000, scoped, tag = 'input window, operand 1']
    #allocation3 [shape = 's32[2]{0}', space=sflag, size = 0x8, scoped, tag = 'scoped memory for mlp_forward.1']
    #allocation4 [shape = 's32[2]{0}', space=sflag, size = 0x8, scoped, tag = 'scoped memory for mlp_forward.1']
    #allocation5 [shape = 'u8[16384]{0}', space=vmem, size = 0x4000, scoped, tag = 'output window, operand 0']
    %9 = vsyncpa [#allocation3], 0
    %s10 = scalar_lea.sflag [#allocation3], 1
    %11 = vsyncpa %s10, 0
    %12 = vsyncpa [#allocation4], 0
    %s13 = scalar_lea.sflag [#allocation4], 1
    %14 = vsyncpa %s13, 0
    loop: start=0, step=1, limit=4
    $region2: #{mlp_forward.1} parent=1 // loop_pre_header
      _
    $region3: #{mlp_forward.1} parent=1 // loop_header
      %s16 = sphi 0, %s20
      %p17 = scmp.ge.s32.totalorder %s16, 4
      %s24 = sphi 0, %s24
      %s26 = sphi 0, %s24
      %s27 = sphi 0, %s26
      %s41 = sphi 0, %s27
      %s47 = sphi 0, %s49
      %s50 = sphi 0, %s47
      %s51 = sphi 0, %s50
      %s67 = sphi 0, %s51
      %s73 = sphi 0, %s75
      %s76 = sphi 0, %s73
      %s77 = sphi 0, %s76
      %s93 = sphi 0, %s77
      %s99 = sphi 0, %s101
      %s102 = sphi 0, %s99
      %s103 = sphi 0, %s102
      %s119 = sphi 0, %s103
      %s125 = sphi 0, %s127
      %s128 = sphi 0, %s125
      %s129 = sphi 0, %s128
      %s145 = sphi 0, %s129
    $region4: #{mlp_forward.1} parent=1 // loop_header_branch
      %19 = sbr.rel (%p17) target = $region8
    $region5: #{mlp_forward.1} parent=1 // loop_body
      %s21 = ssub.s32 %s16, 1
      %s22 = ssub.s32 %s16, 2
      %s23 = sadd.s32 %s16, 1
      %s25 = sadd.s32 %s24, 1
      %p28 = scmp.eq.s32.totalorder %s16, 1
      %p29 = scmp.ne.s32.totalorder %s24, %s26
      %p30 = scmp.eq.s32.totalorder %s16, 0
      %p31 = por %p29, %p30
      %p32 = scmp.ne.s32.totalorder %s24, %s26
      %p33 = scmp.eq.s32.totalorder %s21, 1
      %p34 = por %p32, %p33
      %p35 = scmp.ne.s32.totalorder %s26, %s27
      %p36 = scmp.eq.s32.totalorder %s21, 0
      %p37 = por %p35, %p36
      %p38 = scmp.ne.s32.totalorder %s26, %s27
      %p39 = scmp.eq.s32.totalorder %s22, 1
      %p40 = por %p38, %p39
      %p42 = scmp.ne.s32.totalorder %s27, %s41
      %p43 = scmp.eq.s32.totalorder %s22, 0
      %p44 = por %p42, %p43
      %s45 = ssub.s32 %s16, %s23
      %p46 = scmp.eq.s32.totalorder %s45, 0
      %s48 = sadd.s32 %s47, 1
      %s49 = scalar_select %p46, %s47, %s48
      %p52 = pneg %p46
      %p53 = scmp.eq.s32.totalorder %s16, 1
      %p54 = por %p52, %p53
      %p55 = scmp.ne.s32.totalorder %s47, %s50
      %p56 = scmp.eq.s32.totalorder %s16, 0
      %p57 = por %p55, %p56
      %p58 = scmp.ne.s32.totalorder %s47, %s50
      %p59 = scmp.eq.s32.totalorder %s21, 1
      %p60 = por %p58, %p59
      %p61 = scmp.ne.s32.totalorder %s50, %s51
      %p62 = scmp.eq.s32.totalorder %s21, 0
      %p63 = por %p61, %p62
      %p64 = scmp.ne.s32.totalorder %s50, %s51
      %p65 = scmp.eq.s32.totalorder %s22, 1
      %p66 = por %p64, %p65
      %p68 = scmp.ne.s32.totalorder %s51, %s67
      %p69 = scmp.eq.s32.totalorder %s22, 0
      %p70 = por %p68, %p69
      %s71 = ssub.s32 %s16, %s23
      %p72 = scmp.eq.s32.totalorder %s71, 0
      %s74 = sadd.s32 %s73, 1
      %s75 = scalar_select %p72, %s73, %s74
      %p78 = pneg %p72
      %p79 = scmp.eq.s32.totalorder %s16, 1
      %p80 = por %p78, %p79
      %p81 = scmp.ne.s32.totalorder %s73, %s76
      %p82 = scmp.eq.s32.totalorder %s16, 0
      %p83 = por %p81, %p82
      %p84 = scmp.ne.s32.totalorder %s73, %s76
      %p85 = scmp.eq.s32.totalorder %s21, 1
      %p86 = por %p84, %p85
      %p87 = scmp.ne.s32.totalorder %s76, %s77
      %p88 = scmp.eq.s32.totalorder %s21, 0
      %p89 = por %p87, %p88
      %p90 = scmp.ne.s32.totalorder %s76, %s77
      %p91 = scmp.eq.s32.totalorder %s22, 1
      %p92 = por %p90, %p91
      %p94 = scmp.ne.s32.totalorder %s77, %s93
      %p95 = scmp.eq.s32.totalorder %s22, 0
      %p96 = por %p94, %p95
      %s97 = ssub.s32 %s16, %s23
      %p98 = scmp.eq.s32.totalorder %s97, 0
      %s100 = sadd.s32 %s99, 1
      %s101 = scalar_select %p98, %s99, %s100
      %p104 = pneg %p98
      %p105 = scmp.eq.s32.totalorder %s16, 1
      %p106 = por %p104, %p105
      %p107 = scmp.ne.s32.totalorder %s99, %s102
      %p108 = scmp.eq.s32.totalorder %s16, 0
      %p109 = por %p107, %p108
      %p110 = scmp.ne.s32.totalorder %s99, %s102
      %p111 = scmp.eq.s32.totalorder %s21, 1
      %p112 = por %p110, %p111
      %p113 = scmp.ne.s32.totalorder %s102, %s103
      %p114 = scmp.eq.s32.totalorder %s21, 0
      %p115 = por %p113, %p114
      %p116 = scmp.ne.s32.totalorder %s102, %s103
      %p117 = scmp.eq.s32.totalorder %s22, 1
      %p118 = por %p116, %p117
      %p120 = scmp.ne.s32.totalorder %s103, %s119
      %p121 = scmp.eq.s32.totalorder %s22, 0
      %p122 = por %p120, %p121
      %s123 = ssub.s32 %s16, %s23
      %p124 = scmp.eq.s32.totalorder %s123, 0
      %s126 = sadd.s32 %s125, 1
      %s127 = scalar_select %p124, %s125, %s126
      %p130 = pneg %p124
      %p131 = scmp.eq.s32.totalorder %s16, 1
      %p132 = por %p130, %p131
      %p133 = scmp.ne.s32.totalorder %s125, %s128
      %p134 = scmp.eq.s32.totalorder %s16, 0
      %p135 = por %p133, %p134
      %p136 = scmp.ne.s32.totalorder %s125, %s128
      %p137 = scmp.eq.s32.totalorder %s21, 1
      %p138 = por %p136, %p137
      %p139 = scmp.ne.s32.totalorder %s128, %s129
      %p140 = scmp.eq.s32.totalorder %s21, 0
      %p141 = por %p139, %p140
      %p142 = scmp.ne.s32.totalorder %s128, %s129
      %p143 = scmp.eq.s32.totalorder %s22, 1
      %p144 = por %p142, %p143
      %p146 = scmp.ne.s32.totalorder %s129, %s145
      %p147 = scmp.eq.s32.totalorder %s22, 0
      %p148 = por %p146, %p147
      %p149 = scmp.le.s32.totalorder 1, %s16
      %p150 = scmp.lt.s32.totalorder %s16, 3
      %p151 = pnand %p149, %p150
      %p152 = pneg %p151
      // Predicated region
      $region9: #{mlp_forward.1} parent=5 // pred_check
        _
      $region10: #{mlp_forward.1} parent=5 // pred_check_branch
        %154 = sbr.rel (%p151) target = $region12
      $region11: #{mlp_forward.1} parent=5 // pred_region
        %s155 = ssub.s32 %s16, 1
        // Predicated region
        $region13: #{mlp_forward.1} parent=11 // pred_check
          %p156 = pneg %p37
        $region14: #{mlp_forward.1} parent=11 // pred_check_branch
          %158 = sbr.rel (%p156) target = $region16
        $region15: #{mlp_forward.1} parent=11 // pred_region
          _
        $region16: #{mlp_forward.1} parent=11 // pred_fallthru
          _
      $region12: #{mlp_forward.1} parent=5 // pred_fallthru
        _
      %p159 = scmp.lt.s32.totalorder %s16, 2
      // Predicated region
      $region17: #{mlp_forward.1} parent=5 // pred_check
        %p160 = pneg %p159
      $region18: #{mlp_forward.1} parent=5 // pred_check_branch
        %162 = sbr.rel (%p160) target = $region20
      $region19: #{mlp_forward.1} parent=5 // pred_region
        // Predicated region
        $region21: #{mlp_forward.1} parent=19 // pred_check
          %p163 = pneg %p57
        $region22: #{mlp_forward.1} parent=19 // pred_check_branch
          %165 = sbr.rel (%p163) target = $region24
        $region23: #{mlp_forward.1} parent=19 // pred_region
          %s166 = sand.u32 %s47, 1
          %s167 = scalar_lea.sflag [#allocation3], %s166
          %s168 = sand.u32 %s47, 1
          %s169 = smul.addr %s168, 32
          %s170 = scalar_lea.vmem [#allocation2], %s169
          %s171 = smul.u32 2, %s16
          %s173 = ssub.s32 512, 512
          %174 = vsyncadd %s167, %s173
          %s175 = smul.addr %s171, 64
          %s176 = scalar_lea.hbm %s1, %s175
          %s177 = sshll.u32 %s170, 4
          %s178 = int_to_ptr.vmem [resolvable:$true] %s177
          %183 = dma.hbm_to_vmem [thread:$0]  %s176, 512, %s178, %s167, 256, 128, 8
        $region24: #{mlp_forward.1} parent=19 // pred_fallthru
          _
        // Predicated region
        $region25: #{mlp_forward.1} parent=19 // pred_check
          %p184 = pneg %p83
        $region26: #{mlp_forward.1} parent=19 // pred_check_branch
          %186 = sbr.rel (%p184) target = $region28
        $region27: #{mlp_forward.1} parent=19 // pred_region
          %s187 = smul.u32 2, %s16
          %p188 = scmp.lt.s32.totalorder %s187, 3
          %s189 = scalar_select %p188, %s187, 3
          %s190 = scalar_lea.vmem %s2, %s189
          %s191 = smul.u32 2, %s16
        $region28: #{mlp_forward.1} parent=19 // pred_fallthru
          _
        // Predicated region
        $region29: #{mlp_forward.1} parent=19 // pred_check
          %p192 = pneg %p109
        $region30: #{mlp_forward.1} parent=19 // pred_check_branch
          %194 = sbr.rel (%p192) target = $region32
        $region31: #{mlp_forward.1} parent=19 // pred_region
          %s195 = smul.u32 2, %s16
          %p196 = scmp.lt.s32.totalorder %s195, 3
          %s197 = scalar_select %p196, %s195, 3
          %s198 = scalar_lea.vmem %s3, %s197
          %s199 = smul.u32 2, %s16
        $region32: #{mlp_forward.1} parent=19 // pred_fallthru
          _
      $region20: #{mlp_forward.1} parent=5 // pred_fallthru
        _
      %p200 = scmp.le.s32.totalorder 1, %s16
      %p201 = scmp.lt.s32.totalorder %s16, 3
      %p202 = pnand %p200, %p201
      %p203 = pneg %p202
      // Predicated region
      $region33: #{mlp_forward.1} parent=5 // pred_check
        _
      $region34: #{mlp_forward.1} parent=5 // pred_check_branch
        %205 = sbr.rel (%p202) target = $region36
      $region35: #{mlp_forward.1} parent=5 // pred_region
        %s206 = ssub.s32 %s16, 1
        %s207 = sand.u32 %s50, 1
        %s208 = scalar_lea.sflag [#allocation3], %s207
        %s209 = sand.u32 %s50, 1
        %s210 = smul.addr %s209, 32
        %s211 = scalar_lea.vmem [#allocation2], %s210
        // Predicated region
        $region37: #{mlp_forward.1} parent=35 // pred_check
          %p212 = pneg %p63
        $region38: #{mlp_forward.1} parent=35 // pred_check_branch
          %214 = sbr.rel (%p212) target = $region40
        $region39: #{mlp_forward.1} parent=35 // pred_region
          %215 = dma.done %s208, 512
        $region40: #{mlp_forward.1} parent=35 // pred_fallthru
          _
        %p216 = pneg %p37
        %p217 = pneg %p34
        %s218 = sand.u32 %s50, 1
        %s219 = scalar_lea.sflag [#allocation3], %s218
        %s220 = sand.u32 %s50, 1
        %s221 = smul.addr %s220, 32
        %s222 = scalar_lea.vmem [#allocation2], %s221
        %p223 = pneg %p63
        %p224 = pneg %p60
        %s225 = smul.u32 2, %s21
        %p226 = scmp.lt.s32.totalorder %s225, 3
        %s227 = scalar_select %p226, %s225, 3
        %s228 = scalar_lea.vmem %s2, %s227
        %p229 = pneg %p89
        %p230 = pneg %p86
        %s231 = smul.u32 2, %s21
        %p232 = scmp.lt.s32.totalorder %s231, 3
        %s233 = scalar_select %p232, %s231, 3
        %s234 = scalar_lea.vmem %s3, %s233
        %p235 = pneg %p115
        %p236 = pneg %p112
        %p237 = pneg %p141
        %p238 = pneg %p138
        %s239 = sand.u32 %s128, 1
        %s240 = scalar_lea.sflag [#allocation4], %s239
        %s241 = sand.u32 %s128, 1
        %s242 = smul.addr %s241, 16
        %s243 = scalar_lea.vmem [#allocation5], %s242
        %s244 = smul.u32 2, %s21
        %s245 = smul.u32 2, %s21
        %p246 = scmp.lt.s32.totalorder %s245, 3
        %s247 = scalar_select %p246, %s245, 3
        %s248 = scalar_lea.vmem %s2, %s247
        %s249 = smul.u32 2, %s21
        %s250 = smul.u32 2, %s21
        %p251 = scmp.lt.s32.totalorder %s250, 3
        %s252 = scalar_select %p251, %s250, 3
        %s253 = scalar_lea.vmem %s3, %s252
        %s254 = smul.u32 2, %s21
        %s255 = smul.u32 2, %s21
        %v257 = vld [vmem:[%s0] sm:$0xf]
        %v258 = vld [vmem:[%s211] sm:$0xff]
        %v259 = vld [vmem:[%s211 + $0x8] sm:$0xff]
        %v260 = vld [vmem:[%s211 + $0x10] sm:$0xff]
        %v261 = vld [vmem:[%s211 + $0x18] sm:$0xff]
        %v266 = vunpack.c.l.b16 %v258
        %v267 = vunpack.c.h.b16 %v258
        %v268 = vunpack.c.l.b16 %v259
        %v269 = vunpack.c.h.b16 %v259
        %v270 = vunpack.c.l.b16 %v260
        %v271 = vunpack.c.h.b16 %v260
        %v272 = vunpack.c.l.b16 %v261
        %v273 = vunpack.c.h.b16 %v261
        %v274 = vpack.c.b16 %v268, %v266
        %v275 = vpack.c.b16 %v269, %v267
        %v276 = vpack.c.b16 %v272, %v270
        %v277 = vpack.c.b16 %v273, %v271
        %vm282 = vcmask 261120
        %v284 = vsel %vm282, %v257, 0
        %286 = vmatprep.subr.bf16.mxu0 0
        %287 = vmatpush1.bf16.msra.mxu0 0
        %288 = vmatprep.subr.bf16.mxu0 0
        %289 = vmatpush1.bf16.msra.mxu0 0
        %290 = vmatprep.subr.bf16.mxu0 0
        %291 = vmatpush1.bf16.msra.mxu0 0
        %292 = vmatprep.subr.bf16.mxu0 0
        %293 = vmatpush1.bf16.msra.mxu0 0
        %294 = vmatprep.subr.bf16.mxu0 0
        %295 = vmatpush1.bf16.msra.mxu0 0
        %296 = vmatprep.subr.bf16.mxu0 0
        %297 = vmatpush1.bf16.msra.mxu0 0
        %298 = vmatprep.subr.bf16.mxu0 %v277
        %299 = vmatpush1.bf16.msra.mxu0 %v276
        %300 = vmatprep.subr.bf16.mxu0 %v275
        %301 = vmatpush1.bf16.msra.mxu0 %v274
        %302 = vmatprep.subr.bf16.mxu0 0
        %303 = vmatpush2.bf16.msra.mxu0 0
        %304 = vmatprep.subr.bf16.mxu0 0
        %305 = vmatpush2.bf16.msra.mxu0 0
        %306 = vmatprep.subr.bf16.mxu0 0
        %307 = vmatpush2.bf16.msra.mxu0 0
        %308 = vmatprep.subr.bf16.mxu0 0
        %309 = vmatpush2.bf16.msra.mxu0 0
        %310 = vmatprep.subr.bf16.mxu0 0
        %311 = vmatpush2.bf16.msra.mxu0 0
        %312 = vmatprep.subr.bf16.mxu0 0
        %313 = vmatpush2.bf16.msra.mxu0 0
        %314 = vmatprep.subr.bf16.mxu0 0
        %315 = vmatpush2.bf16.msra.mxu0 0
        %316 = vmatprep.subr.bf16.mxu0 0
        %317 = vmatpush2.bf16.msra.mxu0 0
        %318 = vmatprep.mubr.bf16.mxu0 0
        %319 = vmatmul.mubr.bf16.gmra.mxu0 %v284
        %v320 = vpop.f32.mrf.mxu0
        %v321 = vadd.f32 0.0, %v320
        %v322 = vpop.f32.mrf.mxu0
        %v323 = vadd.f32 0.0, %v322
        %v324 = vpop.f32.mrf.mxu0
        %v325 = vpop.f32.mrf.mxu0
        %326 = vdwg.mxu0
        %v327 = vld [vmem:[%s248] sm:$0x3]
        %v328 = vld [vmem:[%s253] sm:$0x3]
        %v329 = vrot.slane %v321, 4
        %v330 = vadd.f32 %v321, %v329
        %v331 = vrot.slane %v330, 2
        %v332 = vadd.f32 %v330, %v331
        %v333 = vrot.slane %v332, 1
        %v334 = vadd.f32 %v332, %v333
        %v335 = vrot.slane %v323, 4
        %v336 = vadd.f32 %v323, %v335
        %v337 = vrot.slane %v336, 2
        %v338 = vadd.f32 %v336, %v337
        %v339 = vrot.slane %v338, 1
        %v340 = vadd.f32 %v338, %v339
        %v341 = vrcp.pop 8.0
        %v342 = vmul.f32 %v334, %v341
        %v343 = vmul.f32 %v340, %v341
        %v344 = vsub.f32 %v321, %v342
        %v345 = vsub.f32 %v323, %v343
        %v346 = vmul.f32 %v344, %v344
        %v347 = vmul.f32 %v345, %v345
        %v348 = vrot.slane %v346, 4
        %v349 = vadd.f32 %v346, %v348
        %v350 = vrot.slane %v349, 2
        %v351 = vadd.f32 %v349, %v350
        %v352 = vrot.slane %v351, 1
        %v353 = vadd.f32 %v351, %v352
        %v354 = vrot.slane %v347, 4
        %v355 = vadd.f32 %v347, %v354
        %v356 = vrot.slane %v355, 2
        %v357 = vadd.f32 %v355, %v356
        %v358 = vrot.slane %v357, 1
        %v359 = vadd.f32 %v357, %v358
        %v360 = vmul.f32 %v353, %v341
        %v361 = vmul.f32 %v359, %v341
        %v362 = vadd.f32 %v360, 1e-05
        %v363 = vadd.f32 %v361, 1e-05
        %v364 = vrsqrt.pop %v362
        %v365 = vrsqrt.pop %v363
        %v368 = vcombine.low %v364, %v365
        %v370 = vunpack.c.l.s4 1966171168
        %v371 = vunpack.c.0.s8 %v370
        %v372 = vlaneseq
        %v373 = vshrl.u32 %v372, 7
        %v374 = vsub.s32 %v371, %v373
        %v375 = vrot.slane %v368, %v374
        %v377 = vunpack.c.l.s4 1966171168
        %v378 = vunpack.c.0.s8 %v377
        %v379 = vlaneseq
        %v380 = vshrl.u32 %v379, 7
        %v381 = vsub.s32 %v378, %v380
        %v382 = vrot.slane %v375, %v381
        %v384 = vmul.f32 %v327, %v382
        %v386 = vlaneseq
        %v387 = vshrl.u32 %v386, 7
        %v388 = vsub.s32 0, %v387
        %v389 = vrot.slane %v384, %v388
        %v390 = vlaneseq
        %v391 = vshrl.u32 %v390, 7
        %v392 = vsub.s32 1, %v391
        %v393 = vrot.slane %v384, %v392
        %v396 = vmul.f32 %v344, %v389
        %v397 = vmul.f32 %v345, %v393
        %v399 = vlaneseq
        %v400 = vshrl.u32 %v399, 7
        %v401 = vsub.s32 0, %v400
        %v402 = vrot.slane %v328, %v401
        %v403 = vlaneseq
        %v404 = vshrl.u32 %v403, 7
        %v405 = vsub.s32 1, %v404
        %v406 = vrot.slane %v328, %v405
        %v409 = vadd.f32 %v396, %v402
        %v410 = vadd.f32 %v397, %v406
        %v411 = vmax.f32 %v409, 0.0
        %v412 = vmax.f32 %v410, 0.0
        %413 = vst [vmem:[%s243] sm:$0xff] %v411
        %414 = vst [vmem:[%s243 + $0x8] sm:$0xff] %v412
        %s415 = sand.u32 %s128, 1
        %s416 = scalar_lea.sflag [#allocation4], %s415
        %s417 = sand.u32 %s128, 1
        %s418 = smul.addr %s417, 16
        %s419 = scalar_lea.vmem [#allocation5], %s418
        // Predicated region
        $region41: #{mlp_forward.1} parent=35 // pred_check
          %p420 = pneg %p138
        $region42: #{mlp_forward.1} parent=35 // pred_check_branch
          %422 = sbr.rel (%p420) target = $region44
        $region43: #{mlp_forward.1} parent=35 // pred_region
          %s423 = smul.u32 2, %s21
          %s425 = ssub.s32 256, 256
          %426 = vsyncadd %s416, %s425
          %s427 = smul.addr %s423, 128
          %s428 = scalar_lea.hbm %s4, %s427
          %s430 = sshll.u32 %s419, 4
          %s431 = int_to_ptr.vmem [resolvable:$true] %s430
          %433 = dma.vmem_to_hbm [thread:$0]  %s431, 256, %s428, %s416
        $region44: #{mlp_forward.1} parent=35 // pred_fallthru
          _
      $region36: #{mlp_forward.1} parent=5 // pred_fallthru
        _
      %p434 = scmp.le.s32.totalorder 2, %s16
      // Predicated region
      $region45: #{mlp_forward.1} parent=5 // pred_check
        %p435 = pneg %p434
      $region46: #{mlp_forward.1} parent=5 // pred_check_branch
        %437 = sbr.rel (%p435) target = $region48
      $region47: #{mlp_forward.1} parent=5 // pred_region
        %s438 = ssub.s32 %s16, 2
        // Predicated region
        $region49: #{mlp_forward.1} parent=47 // pred_check
          %p439 = pneg %p144
        $region50: #{mlp_forward.1} parent=47 // pred_check_branch
          %441 = sbr.rel (%p439) target = $region52
        $region51: #{mlp_forward.1} parent=47 // pred_region
          %s442 = sand.u32 %s129, 1
          %s443 = scalar_lea.sflag [#allocation4], %s442
          %s444 = sand.u32 %s129, 1
          %s445 = smul.addr %s444, 16
          %s446 = scalar_lea.vmem [#allocation5], %s445
          %447 = dma.done %s443, 256
        $region52: #{mlp_forward.1} parent=47 // pred_fallthru
          _
      $region48: #{mlp_forward.1} parent=5 // pred_fallthru
        _
    $region6: #{mlp_forward.1} parent=1 // loop_footer
      %s20 = sadd.s32 1, %s16
    $region7: #{mlp_forward.1} parent=1 // loop_footer_branch
      %15 = sbr.rel target = $region3
    $region8: #{mlp_forward.1} parent=1 // loop_exit
      _
    %448 = vsyncpa [#allocation3], 1
    %s449 = scalar_lea.sflag [#allocation3], 1
    %450 = vsyncpa %s449, 1
    %451 = vsyncpa [#allocation4], 1
    %s452 = scalar_lea.sflag [#allocation4], 1
    %453 = vsyncpa %s452, 1

</llo_original>
